<compile_context>
chip_gen: v7x
topology: tpu7x:2x2x1
jax: 0.10.0
libtpu: 0.0.40
codegen_flags: <defaults>
</compile_context>

<pallas_src>
import functools

import jax
import jax.numpy as jnp
from jax.experimental import pallas as pl
from jax.experimental.pallas import tpu as pltpu

IGNORE_INDEX = 255
SMOOTH = 1.0


def _round_up(x, m):
    return (x + m - 1) // m * m


def _ce_dice_kernel(scal_ref, x_ref, t_ref, out_ref, *,
                    num_classes, ignore_index, hw_real, tile_p, needs_mask):
    """One (batch image, pixel tile) grid step.

    scal_ref : SMEM (2,) int32   [dice_fill_class, do_replace_flag]
    x_ref    : (1, C, TILE_P)    logits (native dtype)
    t_ref    : (1, 1, TILE_P)    integer labels
    out_ref  : (1, 1, 1, 128)    f32 partial sums in lanes 0..3
    """
    x = x_ref[...].astype(jnp.float32)                 # (1, C, TP)
    t = t_ref[...].astype(jnp.int32)                   # (1, 1, TP)

    # Numerically-stable log-sum-exp; class axis lives on sublanes.
    m = jnp.max(x, axis=1, keepdims=True)              # (1, 1, TP)
    e = jnp.exp(x - m)                                 # (1, C, TP)
    s = jnp.sum(e, axis=1, keepdims=True)              # (1, 1, TP)
    lse = m + jnp.log(s)                               # (1, 1, TP)

    # Dice relabel: ignored pixels -> fill class (replicates the torch branch).
    dice_fill = scal_ref[0]
    do_replace = scal_ref[1]
    is_ignore = (t == ignore_index)
    t_dice = jnp.where((do_replace != 0) & is_ignore, dice_fill, t)

    # Single (C, TP) pass: gather the logit of the (relabeled) target class via
    # a sublane one-hot select + sublane reduce.  For non-ignored pixels
    # t_dice == t, so this also serves the CE gather.
    cls = jax.lax.broadcasted_iota(jnp.int32, (1, num_classes, tile_p), 1)
    logit_td = jnp.sum(jnp.where(cls == t_dice, x, 0.0), axis=1, keepdims=True)

    # Per-pixel softmax probability of the target class (EUP exp); no full
    # (C, TP) softmax tensor is ever materialized.
    p_td = jnp.exp(logit_td - lse)                     # (1, 1, TP)
    in_range = (t_dice >= 0) & (t_dice < num_classes)  # (1, 1, TP)

    valid_ce = jnp.logical_not(is_ignore)
    dice_mask = in_range
    if needs_mask:
        # Only emitted when H*W is not a multiple of the tile; masks are
        # per-pixel (1, 1, TP) quantities, never (C, TP) tensors.
        lane = jax.lax.broadcasted_iota(jnp.int32, (1, 1, tile_p), 2)
        real = (pl.program_id(1) * tile_p + lane) < hw_real
        valid_ce = valid_ce & real
        dice_mask = dice_mask & real

    # Cross entropy: sum + valid count ('mean' is applied in the wrapper).
    ce_sum = jnp.sum(jnp.where(valid_ce, lse - logit_td, 0.0))
    valid_cnt = jnp.sum(valid_ce.astype(jnp.float32))

    # Dice pieces.  soft.sum() == N*H*W analytically -> added in the wrapper.
    inter = jnp.sum(jnp.where(dice_mask, p_td, 0.0))
    onehot_cnt = jnp.sum(dice_mask.astype(jnp.float32))

    # Lane-dense (1, 128) partial-sum row: lanes 0..3 carry the sums.
    ln = jax.lax.broadcasted_iota(jnp.int32, (1, 128), 1)
    row = (jnp.where(ln == 0, ce_sum, 0.0)
           + jnp.where(ln == 1, valid_cnt, 0.0)
           + jnp.where(ln == 2, inter, 0.0)
           + jnp.where(ln == 3, onehot_cnt, 0.0))
    out_ref[...] = row.reshape(1, 1, 1, 128)


def _pick_tiling(hw, num_classes):
    """Tile size + VMEM limit sized from the chip's physical VMEM capacity."""
    try:
        vmem_cap = int(pltpu.get_tpu_info().vmem_capacity_bytes)
    except Exception:
        vmem_cap = 64 * 1024 * 1024                    # conservative (v7x-sized)
    # Headroom under physical capacity: v7x (64 MiB) -> 48 MiB; v5e/v6e -> 96 MiB.
    vmem_limit = min(vmem_cap * 3 // 4, 96 * 1024 * 1024)
    max_tile = 16384 if vmem_cap >= 96 * 1024 * 1024 else 8192
    # Budget: 2x-buffered (C, TP) input blocks + ~4 live (C, TP) f32 temporaries.
    bytes_per_px = num_classes * 4 * 6
    tile_cap = max(256, (vmem_limit * 3 // 5) // bytes_per_px // 128 * 128)
    tile_p = int(min(max_tile, tile_cap, _round_up(hw, 128)))
    return tile_p, int(vmem_limit)


def ce_dice_loss(output_nchw, target_nhw, *, smooth=SMOOTH,
                 ignore_index=IGNORE_INDEX):
    """output_nchw: (N, C, H, W) float logits; target_nhw: (N, H, W) int labels."""
    N, C, H, W = output_nchw.shape
    HW = H * W

    # Free reshapes only — no transpose, no padding copy, no dtype upcast.
    x = output_nchw.reshape(N, C, HW)
    t = target_nhw.reshape(N, 1, HW)

    # Data-dependent Dice relabel scalars (SMEM scalar prefetch).
    t_flat = target_nhw.reshape(-1).astype(jnp.int32)
    tmin = jnp.min(t_flat)
    tmax = jnp.max(t_flat)
    ii = jnp.int32(ignore_index)
    do_replace = jnp.logical_not((tmin <= ii) & (ii < tmax)).astype(jnp.int32)
    scalars = jnp.stack([tmin, do_replace])            # (2,) int32

    tile_p, vmem_limit = _pick_tiling(HW, C)
    num_tiles = pl.cdiv(HW, tile_p)
    grid = (N, num_tiles)
    kernel = functools.partial(
        _ce_dice_kernel, num_classes=C, ignore_index=ignore_index,
        hw_real=HW, tile_p=tile_p, needs_mask=(HW % tile_p) != 0)

    # NOTE: default double-buffering; on v5e, pl.Buffered(3) on the logits spec
    # can hide the longer DMA latency if needed.
    partials = pl.pallas_call(
        kernel,
        out_shape=jax.ShapeDtypeStruct((N, num_tiles, 1, 128), jnp.float32),
        grid_spec=pltpu.PrefetchScalarGridSpec(
            num_scalar_prefetch=1,
            grid=grid,
            in_specs=[
                pl.BlockSpec((1, C, tile_p), lambda n, p, s: (n, 0, p)),
                pl.BlockSpec((1, 1, tile_p), lambda n, p, s: (n, 0, p)),
            ],
            out_specs=pl.BlockSpec((1, 1, 1, 128), lambda n, p, s: (n, p, 0, 0)),
        ),
        compiler_params=pltpu.CompilerParams(
            dimension_semantics=("parallel", "parallel"),
            vmem_limit_bytes=vmem_limit),
    )(scalars, x, t)

    ce_sum = jnp.sum(partials[:, :, 0, 0])
    valid_cnt = jnp.sum(partials[:, :, 0, 1])
    inter = jnp.sum(partials[:, :, 0, 2])
    onehot_sum = jnp.sum(partials[:, :, 0, 3])
    soft_sum = jnp.float32(N * HW)                     # softmax rows sum to 1

    # NOTE: valid_cnt == 0 (all pixels ignored) yields NaN, matching torch's
    # reduction='mean' behavior.
    ce_loss = ce_sum / valid_cnt
    dice_loss = 1.0 - (2.0 * inter + smooth) / (soft_sum + onehot_sum + smooth)
    return ce_loss + dice_loss


def _reference_ce_dice(output_nchw, target_nhw, *, smooth=SMOOTH,
                       ignore_index=IGNORE_INDEX):
    """Pure-JAX reference mirroring the PyTorch CE_DiceLoss forward."""
    N, C, H, W = output_nchw.shape
    x = output_nchw.astype(jnp.float32)
    t = target_nhw.astype(jnp.int32)

    # Cross entropy, reduction='mean', ignore_index
    logits = jnp.transpose(x, (0, 2, 3, 1)).reshape(-1, C)
    tf = t.reshape(-1)
    lse = jax.nn.logsumexp(logits, axis=-1)
    safe = jnp.where(tf == ignore_index, 0, tf)
    logit_t = jnp.take_along_axis(logits, safe[:, None], axis=-1)[:, 0]
    valid = tf != ignore_index
    ce = jnp.where(valid, lse - logit_t, 0.0)
    ce_loss = ce.sum() / valid.sum().astype(jnp.float32)

    # Dice
    tmin = t.min()
    tmax = t.max()
    do_replace = jnp.logical_not((tmin <= ignore_index) & (ignore_index < tmax))
    t_dice = jnp.where(do_replace & (t == ignore_index), tmin, t)
    onehot = jax.nn.one_hot(t_dice, C, axis=1, dtype=jnp.float32)  # (N,C,H,W)
    soft = jax.nn.softmax(x, axis=1)
    inter = (soft * onehot).sum()
    dice_loss = 1.0 - (2.0 * inter + smooth) / (soft.sum() + onehot.sum() + smooth)
    return ce_loss + dice_loss


if __name__ == "__main__":
    key = jax.random.PRNGKey(0)
    k1, k2, k3 = jax.random.split(key, 3)

    N, C, H, W = 2, 4, 16, 16
    logits = jax.random.normal(k1, (N, C, H, W), dtype=jnp.float32)
    target = jax.random.randint(k2, (N, H, W), 0, C, dtype=jnp.int32)
    # sprinkle some ignore_index pixels to exercise both the CE-ignore and the
    # Dice relabel path
    ignore_mask = jax.random.bernoulli(k3, 0.1, (N, H, W))
    target = jnp.where(ignore_mask, IGNORE_INDEX, target)

    out = ce_dice_loss(logits, target)
    out = jax.block_until_ready(out)

    ref = _reference_ce_dice(logits, target)
    assert jnp.allclose(out, ref, rtol=1e-5, atol=1e-5), (out, ref)

    print("KERNEL_OK")
</pallas_src>

<mosaic_0001>
module attributes {stable_mosaic.version = 11 : i64} {
  func.func @_ce_dice_kernel(%arg0: i32, %arg1: i32, %arg2: memref<2xi32, #tpu.memory_space<smem>>, %arg3: memref<1x4x256xf32, #tpu.memory_space<vmem>>, %arg4: memref<1x1x256xi32, #tpu.memory_space<vmem>>, %arg5: memref<1x1x1x128xf32, #tpu.memory_space<vmem>>) attributes {dimension_semantics = [#tpu.dimension_semantics<parallel>, #tpu.dimension_semantics<parallel>], iteration_bounds = array<i64: 2, 1>, scalar_prefetch = 1 : i64, scratch_operands = 0 : i64, tpu.core_type = #tpu.core_type<tc>, window_params = [{transform_indices = @transform_0, window_bounds = array<i64: 1, 4, 256>}, {transform_indices = @transform_1, window_bounds = array<i64: 1, 1, 256>}, {transform_indices = @transform_2, window_bounds = array<i64: 1, 1, 1, 128>}]} {
    %c0 = arith.constant 0 : index
    %c0_0 = arith.constant 0 : index
    %c0_1 = arith.constant 0 : index
    %0 = vector.load %arg3[%c0, %c0_0, %c0_1] : memref<1x4x256xf32, #tpu.memory_space<vmem>>, vector<1x4x256xf32>
    %c0_2 = arith.constant 0 : index
    %c0_3 = arith.constant 0 : index
    %c0_4 = arith.constant 0 : index
    %1 = vector.load %arg4[%c0_2, %c0_3, %c0_4] : memref<1x1x256xi32, #tpu.memory_space<vmem>>, vector<1x1x256xi32>
    %cst = arith.constant dense<0xFF800000> : vector<1x256xf32>
    %2 = vector.multi_reduction <maximumf>, %0, %cst [1] : vector<1x4x256xf32> to vector<1x256xf32>
    %3 = vector.shape_cast %2 : vector<1x256xf32> to vector<1x1x256xf32>
    %4 = vector.broadcast %3 : vector<1x1x256xf32> to vector<1x4x256xf32>
    %5 = arith.subf %0, %4 : vector<1x4x256xf32>
    %6 = math.exp %5 : vector<1x4x256xf32>
    %cst_5 = arith.constant dense<0.000000e+00> : vector<1x256xf32>
    %7 = vector.multi_reduction <add>, %6, %cst_5 [1] : vector<1x4x256xf32> to vector<1x256xf32>
    %8 = vector.shape_cast %7 : vector<1x256xf32> to vector<1x1x256xf32>
    %9 = math.log %8 : vector<1x1x256xf32>
    %10 = arith.addf %3, %9 : vector<1x1x256xf32>
    %c0_6 = arith.constant 0 : index
    %11 = memref.load %arg2[%c0_6] : memref<2xi32, #tpu.memory_space<smem>>
    %c1 = arith.constant 1 : index
    %12 = memref.load %arg2[%c1] : memref<2xi32, #tpu.memory_space<smem>>
    %c255_i32 = arith.constant 255 : i32
    %13 = vector.broadcast %c255_i32 : i32 to vector<1x1x256xi32>
    %14 = arith.cmpi eq, %1, %13 : vector<1x1x256xi32>
    %c0_i32 = arith.constant 0 : i32
    %15 = arith.cmpi ne, %12, %c0_i32 : i32
    %16 = vector.broadcast %15 : i1 to vector<1x1x256xi1>
    %17 = arith.andi %16, %14 : vector<1x1x256xi1>
    %18 = vector.broadcast %11 : i32 to vector<1x1x256xi32>
    %19 = arith.select %17, %18, %1 : vector<1x1x256xi1>, vector<1x1x256xi32>
    %20 = tpu.iota {dimensions = array<i32: 1>} : vector<1x4x256xi32>
    %21 = vector.broadcast %19 : vector<1x1x256xi32> to vector<1x4x256xi32>
    %22 = arith.cmpi eq, %20, %21 : vector<1x4x256xi32>
    %cst_7 = arith.constant 0.000000e+00 : f32
    %23 = vector.broadcast %cst_7 : f32 to vector<1x4x256xf32>
    %24 = arith.select %22, %0, %23 : vector<1x4x256xi1>, vector<1x4x256xf32>
    %cst_8 = arith.constant dense<0.000000e+00> : vector<1x256xf32>
    %25 = vector.multi_reduction <add>, %24, %cst_8 [1] : vector<1x4x256xf32> to vector<1x256xf32>
    %26 = vector.shape_cast %25 : vector<1x256xf32> to vector<1x1x256xf32>
    %27 = arith.subf %26, %10 : vector<1x1x256xf32>
    %28 = math.exp %27 : vector<1x1x256xf32>
    %c0_i32_9 = arith.constant 0 : i32
    %29 = vector.broadcast %c0_i32_9 : i32 to vector<1x1x256xi32>
    %30 = arith.cmpi sge, %19, %29 : vector<1x1x256xi32>
    %c4_i32 = arith.constant 4 : i32
    %31 = vector.broadcast %c4_i32 : i32 to vector<1x1x256xi32>
    %32 = arith.cmpi slt, %19, %31 : vector<1x1x256xi32>
    %33 = arith.andi %30, %32 : vector<1x1x256xi1>
    %cst_10 = arith.constant dense<true> : vector<1x1x256xi1>
    %34 = arith.xori %14, %cst_10 : vector<1x1x256xi1>
    %35 = arith.subf %10, %26 : vector<1x1x256xf32>
    %cst_11 = arith.constant 0.000000e+00 : f32
    %36 = vector.broadcast %cst_11 : f32 to vector<1x1x256xf32>
    %37 = arith.select %34, %35, %36 : vector<1x1x256xi1>, vector<1x1x256xf32>
    %38 = vector.shape_cast %37 : vector<1x1x256xf32> to vector<1x1x1x256xf32>
    %cst_12 = arith.constant dense<0.000000e+00> : vector<1xf32>
    %39 = vector.multi_reduction <add>, %38, %cst_12 [1, 2, 3] : vector<1x1x1x256xf32> to vector<1xf32>
    %40 = vector.shape_cast %39 : vector<1xf32> to vector<1x1x1x1xf32>
    %41 = vector.extract %40[0, 0, 0, 0] : f32 from vector<1x1x1x1xf32>
    %42 = arith.extui %34 : vector<1x1x256xi1> to vector<1x1x256xi32>
    %43 = arith.sitofp %42 : vector<1x1x256xi32> to vector<1x1x256xf32>
    %44 = vector.shape_cast %43 : vector<1x1x256xf32> to vector<1x1x1x256xf32>
    %cst_13 = arith.constant dense<0.000000e+00> : vector<1xf32>
    %45 = vector.multi_reduction <add>, %44, %cst_13 [1, 2, 3] : vector<1x1x1x256xf32> to vector<1xf32>
    %46 = vector.shape_cast %45 : vector<1xf32> to vector<1x1x1x1xf32>
    %47 = vector.extract %46[0, 0, 0, 0] : f32 from vector<1x1x1x1xf32>
    %cst_14 = arith.constant 0.000000e+00 : f32
    %48 = vector.broadcast %cst_14 : f32 to vector<1x1x256xf32>
    %49 = arith.select %33, %28, %48 : vector<1x1x256xi1>, vector<1x1x256xf32>
    %50 = vector.shape_cast %49 : vector<1x1x256xf32> to vector<1x1x1x256xf32>
    %cst_15 = arith.constant dense<0.000000e+00> : vector<1xf32>
    %51 = vector.multi_reduction <add>, %50, %cst_15 [1, 2, 3] : vector<1x1x1x256xf32> to vector<1xf32>
    %52 = vector.shape_cast %51 : vector<1xf32> to vector<1x1x1x1xf32>
    %53 = vector.extract %52[0, 0, 0, 0] : f32 from vector<1x1x1x1xf32>
    %54 = arith.extui %33 : vector<1x1x256xi1> to vector<1x1x256xi32>
    %55 = arith.sitofp %54 : vector<1x1x256xi32> to vector<1x1x256xf32>
    %56 = vector.shape_cast %55 : vector<1x1x256xf32> to vector<1x1x1x256xf32>
    %cst_16 = arith.constant dense<0.000000e+00> : vector<1xf32>
    %57 = vector.multi_reduction <add>, %56, %cst_16 [1, 2, 3] : vector<1x1x1x256xf32> to vector<1xf32>
    %58 = vector.shape_cast %57 : vector<1xf32> to vector<1x1x1x1xf32>
    %59 = vector.extract %58[0, 0, 0, 0] : f32 from vector<1x1x1x1xf32>
    %60 = tpu.iota {dimensions = array<i32: 1>} : vector<1x128xi32>
    %c0_i32_17 = arith.constant 0 : i32
    %61 = vector.broadcast %c0_i32_17 : i32 to vector<1x128xi32>
    %62 = arith.cmpi eq, %60, %61 : vector<1x128xi32>
    %cst_18 = arith.constant 0.000000e+00 : f32
    %63 = vector.broadcast %41 : f32 to vector<1x128xf32>
    %64 = vector.broadcast %cst_18 : f32 to vector<1x128xf32>
    %65 = arith.select %62, %63, %64 : vector<1x128xi1>, vector<1x128xf32>
    %c1_i32 = arith.constant 1 : i32
    %66 = vector.broadcast %c1_i32 : i32 to vector<1x128xi32>
    %67 = arith.cmpi eq, %60, %66 : vector<1x128xi32>
    %cst_19 = arith.constant 0.000000e+00 : f32
    %68 = vector.broadcast %47 : f32 to vector<1x128xf32>
    %69 = vector.broadcast %cst_19 : f32 to vector<1x128xf32>
    %70 = arith.select %67, %68, %69 : vector<1x128xi1>, vector<1x128xf32>
    %71 = arith.addf %65, %70 : vector<1x128xf32>
    %c2_i32 = arith.constant 2 : i32
    %72 = vector.broadcast %c2_i32 : i32 to vector<1x128xi32>
    %73 = arith.cmpi eq, %60, %72 : vector<1x128xi32>
    %cst_20 = arith.constant 0.000000e+00 : f32
    %74 = vector.broadcast %53 : f32 to vector<1x128xf32>
    %75 = vector.broadcast %cst_20 : f32 to vector<1x128xf32>
    %76 = arith.select %73, %74, %75 : vector<1x128xi1>, vector<1x128xf32>
    %77 = arith.addf %71, %76 : vector<1x128xf32>
    %c3_i32 = arith.constant 3 : i32
    %78 = vector.broadcast %c3_i32 : i32 to vector<1x128xi32>
    %79 = arith.cmpi eq, %60, %78 : vector<1x128xi32>
    %cst_21 = arith.constant 0.000000e+00 : f32
    %80 = vector.broadcast %59 : f32 to vector<1x128xf32>
    %81 = vector.broadcast %cst_21 : f32 to vector<1x128xf32>
    %82 = arith.select %79, %80, %81 : vector<1x128xi1>, vector<1x128xf32>
    %83 = arith.addf %77, %82 : vector<1x128xf32>
    %84 = vector.shape_cast %83 : vector<1x128xf32> to vector<1x1x1x128xf32>
    %c0_22 = arith.constant 0 : index
    %c0_23 = arith.constant 0 : index
    %c0_24 = arith.constant 0 : index
    %c0_25 = arith.constant 0 : index
    %85 = vector.load %arg5[%c0_22, %c0_23, %c0_24, %c0_25] : memref<1x1x1x128xf32, #tpu.memory_space<vmem>>, vector<1x1x1x128xf32>
    tpu.vector_store %arg5[%c0_22, %c0_23, %c0_24, %c0_25], %84 {strides = array<i32>} : memref<1x1x1x128xf32, #tpu.memory_space<vmem>>, vector<1x1x1x128xf32>,
    return
  }
  func.func @transform_0(%arg0: i32, %arg1: i32, %arg2: memref<2xi32, #tpu.memory_space<smem>>) -> (i32, i32, i32) {
    %c0_i32 = arith.constant 0 : i32
    %c0_i32_0 = arith.constant 0 : i32
    return %arg0, %c0_i32, %arg1 : i32, i32, i32
  }
  func.func @transform_1(%arg0: i32, %arg1: i32, %arg2: memref<2xi32, #tpu.memory_space<smem>>) -> (i32, i32, i32) {
    %c0_i32 = arith.constant 0 : i32
    %c0_i32_0 = arith.constant 0 : i32
    return %arg0, %c0_i32, %arg1 : i32, i32, i32
  }
  func.func @transform_2(%arg0: i32, %arg1: i32, %arg2: memref<2xi32, #tpu.memory_space<smem>>) -> (i32, i32, i32, i32) {
    %c0_i32 = arith.constant 0 : i32
    %c0_i32_0 = arith.constant 0 : i32
    %c0_i32_1 = arith.constant 0 : i32
    return %arg0, %arg1, %c0_i32, %c0_i32_0 : i32, i32, i32, i32
  }
}

</mosaic_0001>

<llo_original>
// kernel: tpu_custom_call.1
$region0: #{tpu_custom_call.1}
  #allocation0 [shape = 'u32[]', space=smem, size = 0x4, offset = 0x4, fixed_abs, tag = 'smem constant byte address 0x4 - core index']
  #allocation1 [shape = 'u32[144,128]{1,0:T(1,128)}', space=vmem, size = 0x12000, scoped, tag = 'internal scratch']
  #allocation2 [shape = 's32[1]{0}', space=sflag, size = 0x4, scoped, tag = 'scoped memory for tpu_custom_call.1']
  #allocation3 [shape = 'u8[512]{0}', space=smem, size = 0x200, scoped, tag = 'prefetched SMEM operand 0']
  %s0 = inlined_call_operand.hbm [shape: s32[2], index: 0, kind: input, shape index: {}]
  %s1 = inlined_call_operand.hbm [shape: f32[2,4,256], index: 1, kind: input, shape index: {}]
  %s2 = inlined_call_operand.vmem [shape: s32[2,1,256], index: 2, kind: input, shape index: {}]
  %s3 = inlined_call_operand.hbm [shape: f32[2,1,1,128], index: 3, kind: output, shape index: {}]
  %s4 = sld [smem:[#allocation0]]
  $region45: #{tpu_custom_call.1} parent=0
    _
  %s6 = ssub.s32 1, %s4
  %s7 = scalar_select 0, %s6, %s4
  %9 = dma.hbm_to_smem %s0, 16, [#allocation3], [#allocation2]
  %10 = dma.done [#allocation2], 16
  %11 = sfence
  $region1: #{tpu_custom_call.1} parent=0
    #allocation4 [shape = 'u8[8192]{0}', space=vmem, size = 0x2000, scoped, tag = 'input window, operand 1']
    #allocation5 [shape = 's32[2]{0}', space=sflag, size = 0x8, scoped, tag = 'scoped memory for tpu_custom_call.1']
    #allocation6 [shape = 's32[2]{0}', space=sflag, size = 0x8, scoped, tag = 'scoped memory for tpu_custom_call.1']
    #allocation7 [shape = 'u8[1024]{0}', space=vmem, size = 0x400, scoped, tag = 'output window, operand 0']
    %12 = vsyncpa [#allocation5], 0
    %s13 = scalar_lea.sflag [#allocation5], 1
    %14 = vsyncpa %s13, 0
    %15 = vsyncpa [#allocation6], 0
    %s16 = scalar_lea.sflag [#allocation6], 1
    %17 = vsyncpa %s16, 0
    loop: start=0, step=1, limit=4
    $region2: #{tpu_custom_call.1} parent=1 // loop_pre_header
      _
    $region3: #{tpu_custom_call.1} parent=1 // loop_header
      %s19 = sphi 0, %s23
      %p20 = scmp.ge.s32.totalorder %s19, 4
      %s26 = sphi 0, %s38
      %s27 = sphi 0, %s34
      %s28 = sphi 0, %s26
      %s29 = sphi 0, %s27
      %s30 = sphi 0, %s28
      %s31 = sphi 0, %s29
      %s43 = sphi 0, %s45
      %s46 = sphi 0, %s43
      %s47 = sphi 0, %s46
      %s63 = sphi 0, %s47
      %s71 = sphi 0, %s73
      %s74 = sphi 0, %s71
      %s75 = sphi 0, %s74
      %s91 = sphi 0, %s75
      %s99 = sphi 0, %s101
      %s102 = sphi 0, %s99
      %s103 = sphi 0, %s102
      %s119 = sphi 0, %s103
    $region4: #{tpu_custom_call.1} parent=1 // loop_header_branch
      %22 = sbr.rel (%p20) target = $region8
    $region5: #{tpu_custom_call.1} parent=1 // loop_body
      %s24 = ssub.s32 %s19, 1
      %s25 = ssub.s32 %s19, 2
      %s32 = sadd.s32 1, %s27
      %p33 = scmp.ge.s32.totalorder %s32, 1
      %s34 = scalar_select %p33, 0, %s32
      %s35 = sadd.s32 1, %s26
      %s36 = scalar_select %p33, %s35, %s26
      %p37 = scmp.ge.s32.totalorder %s36, 2
      %s38 = scalar_select %p37, 0, %s36
      %s39 = ssub.s32 %s26, %s38
      %s40 = ssub.s32 %s27, %s34
      %s41 = sor.u32 %s39, %s40
      %p42 = scmp.eq.s32.totalorder %s41, 0
      %s44 = sadd.s32 %s43, 1
      %s45 = scalar_select %p42, %s43, %s44
      %p48 = pneg %p42
      %p49 = scmp.eq.s32.totalorder %s19, 1
      %p50 = por %p48, %p49
      %p51 = scmp.ne.s32.totalorder %s43, %s46
      %p52 = scmp.eq.s32.totalorder %s19, 0
      %p53 = por %p51, %p52
      %p54 = scmp.ne.s32.totalorder %s43, %s46
      %p55 = scmp.eq.s32.totalorder %s24, 1
      %p56 = por %p54, %p55
      %p57 = scmp.ne.s32.totalorder %s46, %s47
      %p58 = scmp.eq.s32.totalorder %s24, 0
      %p59 = por %p57, %p58
      %p60 = scmp.ne.s32.totalorder %s46, %s47
      %p61 = scmp.eq.s32.totalorder %s25, 1
      %p62 = por %p60, %p61
      %p64 = scmp.ne.s32.totalorder %s47, %s63
      %p65 = scmp.eq.s32.totalorder %s25, 0
      %p66 = por %p64, %p65
      %s67 = ssub.s32 %s26, %s38
      %s68 = ssub.s32 %s27, %s34
      %s69 = sor.u32 %s67, %s68
      %p70 = scmp.eq.s32.totalorder %s69, 0
      %s72 = sadd.s32 %s71, 1
      %s73 = scalar_select %p70, %s71, %s72
      %p76 = pneg %p70
      %p77 = scmp.eq.s32.totalorder %s19, 1
      %p78 = por %p76, %p77
      %p79 = scmp.ne.s32.totalorder %s71, %s74
      %p80 = scmp.eq.s32.totalorder %s19, 0
      %p81 = por %p79, %p80
      %p82 = scmp.ne.s32.totalorder %s71, %s74
      %p83 = scmp.eq.s32.totalorder %s24, 1
      %p84 = por %p82, %p83
      %p85 = scmp.ne.s32.totalorder %s74, %s75
      %p86 = scmp.eq.s32.totalorder %s24, 0
      %p87 = por %p85, %p86
      %p88 = scmp.ne.s32.totalorder %s74, %s75
      %p89 = scmp.eq.s32.totalorder %s25, 1
      %p90 = por %p88, %p89
      %p92 = scmp.ne.s32.totalorder %s75, %s91
      %p93 = scmp.eq.s32.totalorder %s25, 0
      %p94 = por %p92, %p93
      %s95 = ssub.s32 %s26, %s38
      %s96 = ssub.s32 %s27, %s34
      %s97 = sor.u32 %s95, %s96
      %p98 = scmp.eq.s32.totalorder %s97, 0
      %s100 = sadd.s32 %s99, 1
      %s101 = scalar_select %p98, %s99, %s100
      %p104 = pneg %p98
      %p105 = scmp.eq.s32.totalorder %s19, 1
      %p106 = por %p104, %p105
      %p107 = scmp.ne.s32.totalorder %s99, %s102
      %p108 = scmp.eq.s32.totalorder %s19, 0
      %p109 = por %p107, %p108
      %p110 = scmp.ne.s32.totalorder %s99, %s102
      %p111 = scmp.eq.s32.totalorder %s24, 1
      %p112 = por %p110, %p111
      %p113 = scmp.ne.s32.totalorder %s102, %s103
      %p114 = scmp.eq.s32.totalorder %s24, 0
      %p115 = por %p113, %p114
      %p116 = scmp.ne.s32.totalorder %s102, %s103
      %p117 = scmp.eq.s32.totalorder %s25, 1
      %p118 = por %p116, %p117
      %p120 = scmp.ne.s32.totalorder %s103, %s119
      %p121 = scmp.eq.s32.totalorder %s25, 0
      %p122 = por %p120, %p121
      %p123 = scmp.le.s32.totalorder 1, %s19
      %p124 = scmp.lt.s32.totalorder %s19, 3
      %p125 = pnand %p123, %p124
      %p126 = pneg %p125
      // Predicated region
      $region9: #{tpu_custom_call.1} parent=5 // pred_check
        _
      $region10: #{tpu_custom_call.1} parent=5 // pred_check_branch
        %128 = sbr.rel (%p125) target = $region12
      $region11: #{tpu_custom_call.1} parent=5 // pred_region
        %s129 = ssub.s32 %s19, 1
      $region12: #{tpu_custom_call.1} parent=5 // pred_fallthru
        _
      %p130 = scmp.lt.s32.totalorder %s19, 2
      // Predicated region
      $region13: #{tpu_custom_call.1} parent=5 // pred_check
        %p131 = pneg %p130
      $region14: #{tpu_custom_call.1} parent=5 // pred_check_branch
        %133 = sbr.rel (%p131) target = $region16
      $region15: #{tpu_custom_call.1} parent=5 // pred_region
        // Predicated region
        $region17: #{tpu_custom_call.1} parent=15 // pred_check
          %p134 = pneg %p53
        $region18: #{tpu_custom_call.1} parent=15 // pred_check_branch
          %136 = sbr.rel (%p134) target = $region20
        $region19: #{tpu_custom_call.1} parent=15 // pred_region
          %s137 = sand.u32 %s43, 1
          %s138 = scalar_lea.sflag [#allocation5], %s137
          %s139 = sand.u32 %s43, 1
          %s140 = smul.addr %s139, 8
          %s141 = scalar_lea.vmem [#allocation4], %s140
          %s142 = smul.u32 2, %s27
          %s144 = ssub.s32 128, 128
          %145 = vsyncadd %s138, %s144
          %s146 = smul.addr %s26, 2
          %s147 = sadd.s32 %s142, %s146
          %s148 = smul.addr %s147, 64
          %s149 = scalar_lea.hbm %s1, %s148
          %s151 = sshll.u32 %s141, 4
          %s152 = int_to_ptr.vmem [resolvable:$true] %s151
          %154 = dma.hbm_to_vmem [thread:$0]  %s149, 128, %s152, %s138
        $region20: #{tpu_custom_call.1} parent=15 // pred_fallthru
          _
        // Predicated region
        $region21: #{tpu_custom_call.1} parent=15 // pred_check
          %p155 = pneg %p81
        $region22: #{tpu_custom_call.1} parent=15 // pred_check_branch
          %157 = sbr.rel (%p155) target = $region24
        $region23: #{tpu_custom_call.1} parent=15 // pred_region
          %s158 = smul.u32 2, %s27
          %p159 = scmp.lt.s32.totalorder %s26, 1
          %s160 = scalar_select %p159, %s26, 1
          %p161 = scmp.lt.s32.totalorder %s158, 1
          %s162 = scalar_select %p161, %s158, 1
          %s163 = smul.addr %s160, 2
          %s164 = sadd.s32 %s162, %s163
          %s165 = scalar_lea.vmem %s2, %s164
          %s166 = smul.u32 2, %s27
        $region24: #{tpu_custom_call.1} parent=15 // pred_fallthru
          _
      $region16: #{tpu_custom_call.1} parent=5 // pred_fallthru
        _
      %p167 = scmp.le.s32.totalorder 1, %s19
      %p168 = scmp.lt.s32.totalorder %s19, 3
      %p169 = pnand %p167, %p168
      %p170 = pneg %p169
      // Predicated region
      $region25: #{tpu_custom_call.1} parent=5 // pred_check
        _
      $region26: #{tpu_custom_call.1} parent=5 // pred_check_branch
        %172 = sbr.rel (%p169) target = $region28
      $region27: #{tpu_custom_call.1} parent=5 // pred_region
        %s173 = ssub.s32 %s19, 1
        %s174 = sand.u32 %s46, 1
        %s175 = scalar_lea.sflag [#allocation5], %s174
        %s176 = sand.u32 %s46, 1
        %s177 = smul.addr %s176, 8
        %s178 = scalar_lea.vmem [#allocation4], %s177
        // Predicated region
        $region29: #{tpu_custom_call.1} parent=27 // pred_check
          %p179 = pneg %p59
        $region30: #{tpu_custom_call.1} parent=27 // pred_check_branch
          %181 = sbr.rel (%p179) target = $region32
        $region31: #{tpu_custom_call.1} parent=27 // pred_region
          %182 = dma.done %s175, 128
        $region32: #{tpu_custom_call.1} parent=27 // pred_fallthru
          _
        %s183 = sand.u32 %s46, 1
        %s184 = scalar_lea.sflag [#allocation5], %s183
        %s185 = sand.u32 %s46, 1
        %s186 = smul.addr %s185, 8
        %s187 = scalar_lea.vmem [#allocation4], %s186
        %p188 = pneg %p59
        %p189 = pneg %p56
        %s190 = smul.u32 2, %s29
        %p191 = scmp.lt.s32.totalorder %s28, 1
        %s192 = scalar_select %p191, %s28, 1
        %p193 = scmp.lt.s32.totalorder %s190, 1
        %s194 = scalar_select %p193, %s190, 1
        %s195 = smul.addr %s192, 2
        %s196 = sadd.s32 %s194, %s195
        %s197 = scalar_lea.vmem %s2, %s196
        %p198 = pneg %p87
        %p199 = pneg %p84
        %p200 = pneg %p115
        %p201 = pneg %p112
        %s202 = sand.u32 %s102, 1
        %s203 = scalar_lea.sflag [#allocation6], %s202
        %s204 = sand.u32 %s102, 1
        %s205 = scalar_lea.vmem [#allocation7], %s204
        %s206 = smul.u32 2, %s29
        %s207 = smul.u32 2, %s29
        %p208 = scmp.lt.s32.totalorder %s28, 1
        %s209 = scalar_select %p208, %s28, 1
        %p210 = scmp.lt.s32.totalorder %s207, 1
        %s211 = scalar_select %p210, %s207, 1
        %s212 = smul.addr %s209, 2
        %s213 = sadd.s32 %s211, %s212
        %s214 = scalar_lea.vmem %s2, %s213
        %s215 = smul.u32 2, %s29
        %v216 = vld [vmem:[%s178] sm:$0xff]
        %v217 = vld [vmem:[%s214] sm:$0x3]
        %v219 = vcombine.high %v216, %v216
        %vm221 = vcmask 1043456
        %v222 = vsel %vm221, %v216, -inf
        %v223 = vrot.slane %v222, 4
        %v224 = vmax.f32 %v222, %v223
        %v225 = vrot.slane %v224, 2
        %v226 = vmax.f32 %v224, %v225
        %v227 = vrot.slane %v226, 1
        %v228 = vmax.f32 %v226, %v227
        %v229 = vsel %vm221, %v219, -inf
        %v230 = vrot.slane %v229, 4
        %v231 = vmax.f32 %v229, %v230
        %v232 = vrot.slane %v231, 2
        %v233 = vmax.f32 %v231, %v232
        %v234 = vrot.slane %v233, 1
        %v235 = vmax.f32 %v233, %v234
        %v238 = vcombine.low %v228, %v235
        %v240 = vsub.f32 %v216, %v238
        %v241 = vmul.f32 %v240, 1.442695
        %v242 = vpow.pop %v241
        %v244 = vcombine.high %v242, %v242
        %v246 = vsel %vm221, %v242, 0.0
        %v247 = vrot.slane %v246, 4
        %v248 = vadd.f32 %v246, %v247
        %v249 = vrot.slane %v248, 2
        %v250 = vadd.f32 %v248, %v249
        %v251 = vrot.slane %v250, 1
        %v252 = vadd.f32 %v250, %v251
        %v253 = vsel %vm221, %v244, 0.0
        %v254 = vrot.slane %v253, 4
        %v255 = vadd.f32 %v253, %v254
        %v256 = vrot.slane %v255, 2
        %v257 = vadd.f32 %v255, %v256
        %v258 = vrot.slane %v257, 1
        %v259 = vadd.f32 %v257, %v258
        %v260 = vlog2.pop %v252
        %v261 = vmul.f32 %v260, 0.6931472
        %v262 = vlog2.pop %v259
        %v263 = vmul.f32 %v262, 0.6931472
        %v264 = vadd.f32 %v228, %v261
        %v265 = vadd.f32 %v235, %v263
        %s266 = sld [smem:[#allocation3]]
        %s267 = sld [smem:[#allocation3 + $0x1]]
        %vm268 = vcmp.eq.s32.totalorder %v217, 255
        %p269 = scmp.ne.s32.totalorder %s267, 0
        %s270 = scalar_select %p269, 1, 0
        %v271 = vstv %s270
        %vm272 = vcmp.eq.s32.totalorder %v271, 1
        %vm273 = vmand %vm272, %vm268
        %v274 = vstv %s266
        %v275 = vsel %vm273, %v274, %v217
        %v276 = vlaneseq
        %v277 = vshrl.u32 %v276, 7
        %v278 = vlaneseq
        %v279 = vshrl.u32 %v278, 7
        %v280 = vsub.s32 0, %v279
        %v281 = vrot.slane %v275, %v280
        %v282 = vlaneseq
        %v283 = vshrl.u32 %v282, 7
        %v284 = vsub.s32 1, %v283
        %v285 = vrot.slane %v275, %v284
        %vm286 = vcmp.eq.s32.totalorder %v277, %v281
        %vm287 = vcmp.eq.s32.totalorder %v277, %v285
        %v288 = vsel %vm286, %v216, 0.0
        %v289 = vsel %vm287, %v219, 0.0
        %v290 = vsel %vm221, %v288, 0.0
        %v291 = vrot.slane %v290, 4
        %v292 = vadd.f32 %v290, %v291
        %v293 = vrot.slane %v292, 2
        %v294 = vadd.f32 %v292, %v293
        %v295 = vrot.slane %v294, 1
        %v296 = vadd.f32 %v294, %v295
        %v297 = vsel %vm221, %v289, 0.0
        %v298 = vrot.slane %v297, 4
        %v299 = vadd.f32 %v297, %v298
        %v300 = vrot.slane %v299, 2
        %v301 = vadd.f32 %v299, %v300
        %v302 = vrot.slane %v301, 1
        %v303 = vadd.f32 %v301, %v302
        %v304 = vsub.f32 %v296, %v264
        %v305 = vsub.f32 %v303, %v265
        %v306 = vmul.f32 %v304, 1.442695
        %v307 = vpow.pop %v306
        %v308 = vmul.f32 %v305, 1.442695
        %v309 = vpow.pop %v308
        %vm310 = vcmp.ge.s32.totalorder %v275, 0
        %vm311 = vcmp.lt.s32.totalorder %v275, 4
        %vm312 = vmand %vm310, %vm311
        %vm313 = vmxor %vm268, 1
        %v314 = vsub.f32 %v264, %v296
        %v315 = vsub.f32 %v265, %v303
        %v318 = vcombine.low %v314, %v315
        %v320 = vunpack.c.l.s4 1966171168
        %v321 = vunpack.c.0.s8 %v320
        %v322 = vlaneseq
        %v323 = vshrl.u32 %v322, 7
        %v324 = vsub.s32 %v321, %v323
        %v325 = vrot.slane %v318, %v324
        %v327 = vunpack.c.l.s4 1966171168
        %v328 = vunpack.c.0.s8 %v327
        %v329 = vlaneseq
        %v330 = vshrl.u32 %v329, 7
        %v331 = vsub.s32 %v328, %v330
        %v332 = vrot.slane %v325, %v331
        %v334 = vsel %vm313, %v332, 0.0
        %v336 = vlaneseq
        %v337 = vshrl.u32 %v336, 7
        %v338 = vsub.s32 0, %v337
        %v339 = vrot.slane %v334, %v338
        %v340 = vlaneseq
        %v341 = vshrl.u32 %v340, 7
        %v342 = vsub.s32 1, %v341
        %v343 = vrot.slane %v334, %v342
        %vm346 = vcmask 1040384
        %v347 = vsel %vm346, %v339, 0.0
        %v348 = vsel %vm346, %v343, 0.0
        %v349 = vadd.f32 %v347, %v348
        %350 = vadd.xlane.f32.xlu0 %v349
        %v351 = vpop.xlane.xlu0 %350
        %v352 = vrot.slane %v351, 4
        %v353 = vadd.f32 %v351, %v352
        %v354 = vrot.slane %v353, 2
        %v355 = vadd.f32 %v353, %v354
        %v356 = vrot.slane %v355, 1
        %v357 = vadd.f32 %v355, %v356
        %s358 = vtos %v357
        %v359 = vsel %vm313, 1, 0
        %v360 = vcvt.s32.f32 %v359
        %v362 = vlaneseq
        %v363 = vshrl.u32 %v362, 7
        %v364 = vsub.s32 0, %v363
        %v365 = vrot.slane %v360, %v364
        %v366 = vlaneseq
        %v367 = vshrl.u32 %v366, 7
        %v368 = vsub.s32 1, %v367
        %v369 = vrot.slane %v360, %v368
        %v372 = vsel %vm346, %v365, 0.0
        %v373 = vsel %vm346, %v369, 0.0
        %v374 = vadd.f32 %v372, %v373
        %375 = vadd.xlane.f32.xlu0 %v374
        %v376 = vpop.xlane.xlu0 %375
        %v377 = vrot.slane %v376, 4
        %v378 = vadd.f32 %v376, %v377
        %v379 = vrot.slane %v378, 2
        %v380 = vadd.f32 %v378, %v379
        %v381 = vrot.slane %v380, 1
        %v382 = vadd.f32 %v380, %v381
        %s383 = vtos %v382
        %v386 = vcombine.low %v307, %v309
        %v388 = vunpack.c.l.s4 1966171168
        %v389 = vunpack.c.0.s8 %v388
        %v390 = vlaneseq
        %v391 = vshrl.u32 %v390, 7
        %v392 = vsub.s32 %v389, %v391
        %v393 = vrot.slane %v386, %v392
        %v395 = vunpack.c.l.s4 1966171168
        %v396 = vunpack.c.0.s8 %v395
        %v397 = vlaneseq
        %v398 = vshrl.u32 %v397, 7
        %v399 = vsub.s32 %v396, %v398
        %v400 = vrot.slane %v393, %v399
        %v402 = vsel %vm312, %v400, 0.0
        %v404 = vlaneseq
        %v405 = vshrl.u32 %v404, 7
        %v406 = vsub.s32 0, %v405
        %v407 = vrot.slane %v402, %v406
        %v408 = vlaneseq
        %v409 = vshrl.u32 %v408, 7
        %v410 = vsub.s32 1, %v409
        %v411 = vrot.slane %v402, %v410
        %v414 = vsel %vm346, %v407, 0.0
        %v415 = vsel %vm346, %v411, 0.0
        %v416 = vadd.f32 %v414, %v415
        %417 = vadd.xlane.f32.xlu0 %v416
        %v418 = vpop.xlane.xlu0 %417
        %v419 = vrot.slane %v418, 4
        %v420 = vadd.f32 %v418, %v419
        %v421 = vrot.slane %v420, 2
        %v422 = vadd.f32 %v420, %v421
        %v423 = vrot.slane %v422, 1
        %v424 = vadd.f32 %v422, %v423
        %s425 = vtos %v424
        %v426 = vsel %vm312, 1, 0
        %v427 = vcvt.s32.f32 %v426
        %v429 = vlaneseq
        %v430 = vshrl.u32 %v429, 7
        %v431 = vsub.s32 0, %v430
        %v432 = vrot.slane %v427, %v431
        %v433 = vlaneseq
        %v434 = vshrl.u32 %v433, 7
        %v435 = vsub.s32 1, %v434
        %v436 = vrot.slane %v427, %v435
        %v439 = vsel %vm346, %v432, 0.0
        %v440 = vsel %vm346, %v436, 0.0
        %v441 = vadd.f32 %v439, %v440
        %442 = vadd.xlane.f32.xlu0 %v441
        %v443 = vpop.xlane.xlu0 %442
        %v444 = vrot.slane %v443, 4
        %v445 = vadd.f32 %v443, %v444
        %v446 = vrot.slane %v445, 2
        %v447 = vadd.f32 %v445, %v446
        %v448 = vrot.slane %v447, 1
        %v449 = vadd.f32 %v447, %v448
        %s450 = vtos %v449
        %v451 = vlaneseq
        %v452 = vand.u32 %v451, 127
        %vm453 = vcmp.eq.s32.totalorder %v452, 0
        %v454 = vstv %s358
        %v455 = vsel %vm453, %v454, 0.0
        %vm456 = vcmp.eq.s32.totalorder %v452, 1
        %v457 = vstv %s383
        %v458 = vsel %vm456, %v457, 0.0
        %v459 = vadd.f32 %v455, %v458
        %vm460 = vcmp.eq.s32.totalorder %v452, 2
        %v461 = vstv %s425
        %v462 = vsel %vm460, %v461, 0.0
        %v463 = vadd.f32 %v459, %v462
        %vm464 = vcmp.eq.s32.totalorder %v452, 3
        %v465 = vstv %s450
        %v466 = vsel %vm464, %v465, 0.0
        %v467 = vadd.f32 %v463, %v466
        %468 = vst [vmem:[%s205] sm:$0x1] %v467
        %s469 = sand.u32 %s102, 1
        %s470 = scalar_lea.sflag [#allocation6], %s469
        %s471 = sand.u32 %s102, 1
        %s472 = scalar_lea.vmem [#allocation7], %s471
        // Predicated region
        $region33: #{tpu_custom_call.1} parent=27 // pred_check
          %p473 = pneg %p112
        $region34: #{tpu_custom_call.1} parent=27 // pred_check_branch
          %475 = sbr.rel (%p473) target = $region36
        $region35: #{tpu_custom_call.1} parent=27 // pred_region
          %s477 = ssub.s32 16, 16
          %478 = vsyncadd %s470, %s477
          %s479 = sadd.s32 %s29, %s28
          %s480 = smul.addr %s479, 16
          %s481 = scalar_lea.hbm %s3, %s480
          %s483 = sshll.u32 %s472, 4
          %s484 = int_to_ptr.vmem [resolvable:$true] %s483
          %486 = dma.vmem_to_hbm [thread:$0]  %s484, 16, %s481, %s470
        $region36: #{tpu_custom_call.1} parent=27 // pred_fallthru
          _
      $region28: #{tpu_custom_call.1} parent=5 // pred_fallthru
        _
      %p487 = scmp.le.s32.totalorder 2, %s19
      // Predicated region
      $region37: #{tpu_custom_call.1} parent=5 // pred_check
        %p488 = pneg %p487
      $region38: #{tpu_custom_call.1} parent=5 // pred_check_branch
        %490 = sbr.rel (%p488) target = $region40
      $region39: #{tpu_custom_call.1} parent=5 // pred_region
        %s491 = ssub.s32 %s19, 2
        // Predicated region
        $region41: #{tpu_custom_call.1} parent=39 // pred_check
          %p492 = pneg %p118
        $region42: #{tpu_custom_call.1} parent=39 // pred_check_branch
          %494 = sbr.rel (%p492) target = $region44
        $region43: #{tpu_custom_call.1} parent=39 // pred_region
          %s495 = sand.u32 %s103, 1
          %s496 = scalar_lea.sflag [#allocation6], %s495
          %s497 = sand.u32 %s103, 1
          %s498 = scalar_lea.vmem [#allocation7], %s497
          %499 = dma.done %s496, 16
        $region44: #{tpu_custom_call.1} parent=39 // pred_fallthru
          _
      $region40: #{tpu_custom_call.1} parent=5 // pred_fallthru
        _
    $region6: #{tpu_custom_call.1} parent=1 // loop_footer
      %s23 = sadd.s32 1, %s19
    $region7: #{tpu_custom_call.1} parent=1 // loop_footer_branch
      %18 = sbr.rel target = $region3
    $region8: #{tpu_custom_call.1} parent=1 // loop_exit
      _
    %500 = vsyncpa [#allocation5], 1
    %s501 = scalar_lea.sflag [#allocation5], 1
    %502 = vsyncpa %s501, 1
    %503 = vsyncpa [#allocation6], 1
    %s504 = scalar_lea.sflag [#allocation6], 1
    %505 = vsyncpa %s504, 1

</llo_original>
